<compile_context>
chip_gen: v6e
topology: v6e:2x2x1
jax: 0.10.0
libtpu: 0.0.40
codegen_flags: <defaults>
</compile_context>

<pallas_src>
import jax
import jax.numpy as jnp
import numpy as np
from jax import lax
from jax.experimental import pallas as pl
from jax.experimental.pallas import tpu as pltpu

_VMEM_BUDGET = 24 * 1024 * 1024  # conservative: fits default 32 MiB scoped limit everywhere


def _ssrnn_kernel(x_ref, wbig_ref, bbig_ref, wfc_ref, nbfc_ref, o_ref, h_ref):
    """One invocation = one (channel tile, batch chunk).

    x_ref : (Bt, S_pad, ct)   o_ref : (Bt, P, ct)   h_ref : (H, ct) persistent scratch
    """
    bt = x_ref.shape[0]
    H, ct = h_ref.shape
    P = o_ref.shape[1]

    # Fresh recurrent state only at the FIRST batch chunk of each channel tile; the
    # scratch then carries h across batch chunks (batch axis is last + "arbitrary").
    @pl.when(pl.program_id(1) == 0)
    def _():
        h_ref[...] = jnp.zeros_like(h_ref)

    # Loop-invariant weights + hoisted bias broadcasts (broadcasts are NOT CSE'd by JAX).
    w_big = wbig_ref[...]                                    # (2H, S_pad + H)
    w_fc = wfc_ref[...]                                      # (P, H)
    b_big = jnp.broadcast_to(bbig_ref[...], (2 * H, ct))     # [b_in; b_h] over lanes
    neg_bfc = jnp.broadcast_to(nbfc_ref[...], (P, ct))       # -b_fc over lanes
    cdt = w_big.dtype

    def step(t, h):
        # One fused MXU push: [[W_in,0],[0,W_h]] @ [x_t; h] -> rows [0:H]=inp, [H:2H]=hid.
        xh = jnp.concatenate([x_ref[t], h.astype(cdt)], axis=0)          # (S_pad+H, ct)
        pre = jnp.dot(w_big, xh, preferred_element_type=jnp.float32) + b_big
        inp = pre[:H]
        hid = pre[H:]
        act = jnp.maximum(inp + hid, 0.0)
        h_new = jnp.maximum(act + hid, 0.0)
        # fc + threshold: sigmoid(z + b) >= 0.5  <=>  z >= -b  (no EUP, no extra bias add).
        logits = jnp.dot(w_fc, h_new.astype(cdt), preferred_element_type=jnp.float32)
        o_ref[t] = jnp.where(logits >= neg_bfc, 1.0, 0.0).astype(o_ref.dtype)
        return h_new

    # Hidden state stays in vregs for the whole chunk; scratch written once at the end.
    # (A separate fc pass over a (Bt,H,ct) scratch was deemed optional by the review and
    #  is skipped — unroll=2 already lets the fc dot/store overlap the serial chain.)
    h_ref[...] = lax.fori_loop(0, bt, step, h_ref[...], unroll=2)


def _round_up(v, m):
    return (v + m - 1) // m * m


def _pick_tiles(B, S_pad, P, H, C_pad, x_itemsize, channel_tile, batch_tile,
                vmem_budget=_VMEM_BUDGET):
    # --- channel tile: multiple of 128 dividing C_pad -----------------------------------
    if channel_tile is not None:
        ct = min(channel_tile, C_pad)
        assert ct % 128 == 0 and C_pad % ct == 0, \
            "channel_tile must be a multiple of 128 dividing the padded channel count"
    else:
        # Prefer >= 2 tiles when possible so the "parallel" axis feeds both v7x
        # TensorCores; cap per-tile width to bound VMEM for very large C.
        target = C_pad // 2 if C_pad >= 256 else C_pad
        target = min(target, 512)
        ct = 128
        for cand in range(128, C_pad + 1, 128):
            if C_pad % cand == 0 and cand <= target:
                ct = cand

    # --- batch chunk: divisor of B whose double-buffered footprint fits the budget ------
    def footprint(bt):
        x_bytes = 2 * bt * S_pad * ct * x_itemsize           # double-buffered input
        out_bytes = 2 * bt * P * ct * 4                      # double-buffered output (f32)
        w_bytes = 2 * (2 * H * (S_pad + H) + P * H) * x_itemsize + (2 * H + P) * 4
        scratch = H * ct * 4                                 # carried hidden state
        return x_bytes + out_bytes + w_bytes + scratch

    if batch_tile is not None:
        bt = batch_tile
        assert B % bt == 0, "batch_tile must divide the batch size"
    else:
        bt = 1
        for cand in range(1, B + 1):
            if B % cand == 0 and footprint(cand) <= vmem_budget:
                bt = cand
    return ct, bt


def ssrnn_forward(x, params, *, channel_tile=None, batch_tile=None,
                  compute_dtype=jnp.bfloat16):
    """x: (batch, seq_len, channels) f32 -> (batch, pred_len, channels) f32 in {0, 1}.

    compute_dtype: dtype of the MXU operands (accumulation is always f32). bf16 is native
    MXU throughput on all TPU gens; use jnp.float32 for bit-exact match with the PyTorch
    f32 module (logits extremely close to 0 may otherwise flip the binary threshold).
    """
    w_in, b_in, w_h, b_h, w_fc, b_fc = params
    B, S, C = x.shape
    H = w_in.shape[0]
    P = w_fc.shape[0]
    assert C > 1 and S > 1, "kernel assumes the PyTorch .squeeze() is a no-op"

    S_pad = _round_up(S, 8)      # sublane-aligned x_ref[t] views
    C_pad = _round_up(C, 128)    # lane-dense tiles, unmasked output stores

    ct, bt = _pick_tiles(B, S_pad, P, H, C_pad, jnp.dtype(compute_dtype).itemsize,
                         channel_tile, batch_tile)
    n_ct = C_pad // ct
    n_bt = B // bt

    # --- wrapper-side weight prep (traced once, outside the recurrence) -----------------
    f32 = jnp.float32
    w_in_p = jnp.pad(w_in.astype(f32), ((0, 0), (0, S_pad - S)))
    # Block-diagonal fusion of the two hidden matmuls -> one MXU push per step.
    w_big = jnp.block([[w_in_p, jnp.zeros((H, H), f32)],
                       [jnp.zeros((H, S_pad), f32), w_h.astype(f32)]]).astype(compute_dtype)
    b_big = jnp.concatenate([b_in, b_h]).astype(f32).reshape(2 * H, 1)
    w_fc_c = w_fc.astype(compute_dtype)
    neg_bfc = (-b_fc).astype(f32).reshape(P, 1)

    x_p = jnp.pad(x, ((0, 0), (0, S_pad - S), (0, C_pad - C))).astype(compute_dtype)

    full2d = lambda c, b: (0, 0)

    out = pl.pallas_call(
        _ssrnn_kernel,
        out_shape=jax.ShapeDtypeStruct((B, P, C_pad), jnp.float32),
        grid_spec=pltpu.PrefetchScalarGridSpec(
            num_scalar_prefetch=0,
            grid=(n_ct, n_bt),                                    # batch axis LAST (recurrence)
            in_specs=[
                pl.BlockSpec((bt, S_pad, ct), lambda c, b: (b, 0, c)),   # x chunk
                pl.BlockSpec((2 * H, S_pad + H), full2d),                # W_big (block-diag)
                pl.BlockSpec((2 * H, 1), full2d),                        # [b_in; b_h]
                pl.BlockSpec((P, H), full2d),                            # W_fc
                pl.BlockSpec((P, 1), full2d),                            # -b_fc
            ],
            out_specs=pl.BlockSpec((bt, P, ct), lambda c, b: (b, 0, c)),
            scratch_shapes=[pltpu.VMEM((H, ct), jnp.float32)],           # carried hidden state
        ),
        compiler_params=pltpu.CompilerParams(
            dimension_semantics=("parallel", "arbitrary"),   # channels parallel, batch serial
        ),
    )(x_p, w_big, b_big, w_fc_c, neg_bfc)

    return out[:, :, :C]  # drop channel padding; already (B, P, C) == PyTorch permute(1,2,0)


def _reference_forward(x, params):
    """Pure-JAX f32 reference mirroring the PyTorch forward (individual=False)."""
    w_in, b_in, w_h, b_h, w_fc, b_fc = params
    x_p = jnp.transpose(x, (0, 2, 1))          # (B, C, S)
    B, C, S = x_p.shape
    H = w_in.shape[0]
    h = jnp.zeros((C, H), jnp.float32)
    hs = []
    for t in range(B):
        inp = x_p[t] @ w_in.T + b_in
        hid = h @ w_h.T + b_h
        act = jnp.maximum(inp + hid, 0.0)
        h = jnp.maximum(act + hid, 0.0)
        hs.append(h)
    out = jnp.stack(hs, axis=1)                # (C, B, H)
    logits = out @ w_fc.T + b_fc               # (C, B, P)
    prob = jax.nn.sigmoid(logits)
    binary = jnp.where(prob >= 0.5, 1.0, 0.0)
    return jnp.transpose(binary, (1, 2, 0))    # (B, P, C)


def init_params(key, seq_len, hidden_size, pred_len):
    """PyTorch-Linear-style init: U(-1/sqrt(fan_in), 1/sqrt(fan_in))."""
    ks = jax.random.split(key, 6)

    def lin(kw, kb, out_f, in_f):
        bound = 1.0 / np.sqrt(in_f)
        w = jax.random.uniform(kw, (out_f, in_f), jnp.float32, -bound, bound)
        b = jax.random.uniform(kb, (out_f,), jnp.float32, -bound, bound)
        return w, b

    w_in, b_in = lin(ks[0], ks[1], hidden_size, seq_len)      # input_layer: seq_len -> hidden
    w_h, b_h = lin(ks[2], ks[3], hidden_size, hidden_size)    # hidden_layer: hidden -> hidden
    w_fc, b_fc = lin(ks[4], ks[5], pred_len, hidden_size)     # fc: hidden -> pred_len
    return (w_in, b_in, w_h, b_h, w_fc, b_fc)


if __name__ == "__main__":
    # small shapes consistent with the module
    batch, seq_len, channels = 2, 8, 4
    hidden_size, pred_len = 32, 4

    key = jax.random.PRNGKey(0)
    k_x, k_p = jax.random.split(key)
    x = jax.random.normal(k_x, (batch, seq_len, channels), jnp.float32)
    params = init_params(k_p, seq_len, hidden_size, pred_len)

    ref = jax.block_until_ready(_reference_forward(x, params))

    # f32 path: bit-exact agreement with the PyTorch-style reference.
    out_f32 = jax.block_until_ready(
        ssrnn_forward(x, params, compute_dtype=jnp.float32))
    assert out_f32.shape == (batch, pred_len, channels), out_f32.shape
    assert bool(jnp.allclose(out_f32, ref)), "Pallas f32 kernel mismatch vs reference"

    # bf16 perf path: run to confirm it compiles/executes (binary outputs can legitimately
    # flip for logits ~0, so no hard equality assert on this path).
    out_bf16 = jax.block_until_ready(
        ssrnn_forward(x, params, compute_dtype=jnp.bfloat16))
    assert out_bf16.shape == (batch, pred_len, channels), out_bf16.shape

    print("KERNEL_OK")
</pallas_src>

<mosaic_0001>
module attributes {stable_mosaic.version = 11 : i64} {
  func.func @_ssrnn_kernel(%arg0: i32, %arg1: i32, %arg2: memref<2x8x128xf32, #tpu.memory_space<vmem>>, %arg3: memref<64x40xf32, #tpu.memory_space<vmem>>, %arg4: memref<64x1xf32, #tpu.memory_space<vmem>>, %arg5: memref<4x32xf32, #tpu.memory_space<vmem>>, %arg6: memref<4x1xf32, #tpu.memory_space<vmem>>, %arg7: memref<2x4x128xf32, #tpu.memory_space<vmem>>, %arg8: memref<32x128xf32, #tpu.memory_space<vmem>>) attributes {dimension_semantics = [#tpu.dimension_semantics<parallel>, #tpu.dimension_semantics<arbitrary>], iteration_bounds = array<i64: 1, 1>, scalar_prefetch = 0 : i64, scratch_operands = 1 : i64, tpu.core_type = #tpu.core_type<tc>, window_params = [{transform_indices = @transform_0, window_bounds = array<i64: 2, 8, 128>}, {pipeline_mode = #tpu.pipeline_mode<synchronous>, transform_indices = @transform_1, window_bounds = array<i64: 64, 40>}, {pipeline_mode = #tpu.pipeline_mode<synchronous>, transform_indices = @transform_2, window_bounds = array<i64: 64, 1>}, {pipeline_mode = #tpu.pipeline_mode<synchronous>, transform_indices = @transform_3, window_bounds = array<i64: 4, 32>}, {pipeline_mode = #tpu.pipeline_mode<synchronous>, transform_indices = @transform_4, window_bounds = array<i64: 4, 1>}, {transform_indices = @transform_5, window_bounds = array<i64: 2, 4, 128>}]} {
    %c0_i32 = arith.constant 0 : i32
    %0 = arith.cmpi eq, %arg1, %c0_i32 : i32
    %1 = arith.extui %0 : i1 to i32
    %c0_i32_0 = arith.constant 0 : i32
    %2 = arith.cmpi ne, %1, %c0_i32_0 : i32
    scf.if %2 {
      %cst_32 = arith.constant 0.000000e+00 : f32
      %59 = vector.broadcast %cst_32 : f32 to vector<32x128xf32>
      %c0_33 = arith.constant 0 : index
      %c0_34 = arith.constant 0 : index
      %60 = vector.load %arg8[%c0_33, %c0_34] : memref<32x128xf32, #tpu.memory_space<vmem>>, vector<32x128xf32>
      tpu.vector_store %arg8[%c0_33, %c0_34], %59 {strides = array<i32>} : memref<32x128xf32, #tpu.memory_space<vmem>>, vector<32x128xf32>,
    } else {
    }
    %c0 = arith.constant 0 : index
    %c0_1 = arith.constant 0 : index
    %3 = vector.load %arg3[%c0, %c0_1] : memref<64x40xf32, #tpu.memory_space<vmem>>, vector<64x40xf32>
    %c0_2 = arith.constant 0 : index
    %c0_3 = arith.constant 0 : index
    %4 = vector.load %arg5[%c0_2, %c0_3] : memref<4x32xf32, #tpu.memory_space<vmem>>, vector<4x32xf32>
    %c0_4 = arith.constant 0 : index
    %c0_5 = arith.constant 0 : index
    %5 = vector.load %arg4[%c0_4, %c0_5] : memref<64x1xf32, #tpu.memory_space<vmem>>, vector<64x1xf32>
    %6 = vector.shape_cast %5 : vector<64x1xf32> to vector<64x1xf32>
    %7 = vector.broadcast %6 : vector<64x1xf32> to vector<64x128xf32>
    %c0_6 = arith.constant 0 : index
    %c0_7 = arith.constant 0 : index
    %8 = vector.load %arg6[%c0_6, %c0_7] : memref<4x1xf32, #tpu.memory_space<vmem>>, vector<4x1xf32>
    %9 = vector.shape_cast %8 : vector<4x1xf32> to vector<4x1xf32>
    %10 = vector.broadcast %9 : vector<4x1xf32> to vector<4x128xf32>
    %c0_8 = arith.constant 0 : index
    %c0_9 = arith.constant 0 : index
    %11 = vector.load %arg8[%c0_8, %c0_9] : memref<32x128xf32, #tpu.memory_space<vmem>>, vector<32x128xf32>
    %c0_i32_10 = arith.constant 0 : i32
    %12 = arith.index_cast %c0_i32_10 : i32 to index
    %c0_11 = arith.constant 0 : index
    %c0_12 = arith.constant 0 : index
    %13 = vector.load %arg2[%12, %c0_11, %c0_12] : memref<2x8x128xf32, #tpu.memory_space<vmem>>, vector<1x8x128xf32>
    %14 = vector.shape_cast %13 : vector<1x8x128xf32> to vector<8x128xf32>
    %15 = tpu.concatenate %14, %11 in 0 : vector<8x128xf32>, vector<32x128xf32> -> vector<40x128xf32>
    %cst = arith.constant dense<0.000000e+00> : vector<64x128xf32>
    %16 = tpu.matmul %3, %15, %cst {dimension_numbers = #tpu.dot_dimension_numbers<[1], [0], [0], [1], [0, 0, 1, 1], [], []>} : vector<64x40xf32>, vector<40x128xf32>, vector<64x128xf32> -> vector<64x128xf32>
    %17 = arith.addf %16, %7 : vector<64x128xf32>
    %18 = vector.extract_strided_slice %17 {offsets = [0, 0], sizes = [32, 128], strides = [1, 1]} : vector<64x128xf32> to vector<32x128xf32>
    %19 = vector.extract_strided_slice %17 {offsets = [32, 0], sizes = [32, 128], strides = [1, 1]} : vector<64x128xf32> to vector<32x128xf32>
    %20 = arith.addf %18, %19 : vector<32x128xf32>
    %cst_13 = arith.constant 0.000000e+00 : f32
    %21 = vector.broadcast %cst_13 : f32 to vector<32x128xf32>
    %22 = arith.maximumf %20, %21 : vector<32x128xf32>
    %23 = arith.addf %22, %19 : vector<32x128xf32>
    %cst_14 = arith.constant 0.000000e+00 : f32
    %24 = vector.broadcast %cst_14 : f32 to vector<32x128xf32>
    %25 = arith.maximumf %23, %24 : vector<32x128xf32>
    %cst_15 = arith.constant dense<0.000000e+00> : vector<4x128xf32>
    %26 = tpu.matmul %4, %25, %cst_15 {dimension_numbers = #tpu.dot_dimension_numbers<[1], [0], [0], [1], [0, 0, 1, 1], [], []>} : vector<4x32xf32>, vector<32x128xf32>, vector<4x128xf32> -> vector<4x128xf32>
    %27 = arith.cmpf oge, %26, %10 : vector<4x128xf32>
    %cst_16 = arith.constant 1.000000e+00 : f32
    %cst_17 = arith.constant 0.000000e+00 : f32
    %28 = vector.broadcast %cst_16 : f32 to vector<4x128xf32>
    %29 = vector.broadcast %cst_17 : f32 to vector<4x128xf32>
    %30 = arith.select %27, %28, %29 : vector<4x128xi1>, vector<4x128xf32>
    %31 = arith.index_cast %c0_i32_10 : i32 to index
    %c0_18 = arith.constant 0 : index
    %c0_19 = arith.constant 0 : index
    %32 = vector.load %arg7[%31, %c0_18, %c0_19] : memref<2x4x128xf32, #tpu.memory_space<vmem>>, vector<1x4x128xf32>
    %33 = vector.shape_cast %32 : vector<1x4x128xf32> to vector<4x128xf32>
    %34 = vector.shape_cast %30 : vector<4x128xf32> to vector<1x4x128xf32>
    tpu.vector_store %arg7[%31, %c0_18, %c0_19], %34 {strides = array<i32>} : memref<2x4x128xf32, #tpu.memory_space<vmem>>, vector<1x4x128xf32>,
    %c1_i32 = arith.constant 1 : i32
    %35 = arith.index_cast %c1_i32 : i32 to index
    %c0_20 = arith.constant 0 : index
    %c0_21 = arith.constant 0 : index
    %36 = vector.load %arg2[%35, %c0_20, %c0_21] : memref<2x8x128xf32, #tpu.memory_space<vmem>>, vector<1x8x128xf32>
    %37 = vector.shape_cast %36 : vector<1x8x128xf32> to vector<8x128xf32>
    %38 = tpu.concatenate %37, %25 in 0 : vector<8x128xf32>, vector<32x128xf32> -> vector<40x128xf32>
    %cst_22 = arith.constant dense<0.000000e+00> : vector<64x128xf32>
    %39 = tpu.matmul %3, %38, %cst_22 {dimension_numbers = #tpu.dot_dimension_numbers<[1], [0], [0], [1], [0, 0, 1, 1], [], []>} : vector<64x40xf32>, vector<40x128xf32>, vector<64x128xf32> -> vector<64x128xf32>
    %40 = arith.addf %39, %7 : vector<64x128xf32>
    %41 = vector.extract_strided_slice %40 {offsets = [0, 0], sizes = [32, 128], strides = [1, 1]} : vector<64x128xf32> to vector<32x128xf32>
    %42 = vector.extract_strided_slice %40 {offsets = [32, 0], sizes = [32, 128], strides = [1, 1]} : vector<64x128xf32> to vector<32x128xf32>
    %43 = arith.addf %41, %42 : vector<32x128xf32>
    %cst_23 = arith.constant 0.000000e+00 : f32
    %44 = vector.broadcast %cst_23 : f32 to vector<32x128xf32>
    %45 = arith.maximumf %43, %44 : vector<32x128xf32>
    %46 = arith.addf %45, %42 : vector<32x128xf32>
    %cst_24 = arith.constant 0.000000e+00 : f32
    %47 = vector.broadcast %cst_24 : f32 to vector<32x128xf32>
    %48 = arith.maximumf %46, %47 : vector<32x128xf32>
    %cst_25 = arith.constant dense<0.000000e+00> : vector<4x128xf32>
    %49 = tpu.matmul %4, %48, %cst_25 {dimension_numbers = #tpu.dot_dimension_numbers<[1], [0], [0], [1], [0, 0, 1, 1], [], []>} : vector<4x32xf32>, vector<32x128xf32>, vector<4x128xf32> -> vector<4x128xf32>
    %50 = arith.cmpf oge, %49, %10 : vector<4x128xf32>
    %cst_26 = arith.constant 1.000000e+00 : f32
    %cst_27 = arith.constant 0.000000e+00 : f32
    %51 = vector.broadcast %cst_26 : f32 to vector<4x128xf32>
    %52 = vector.broadcast %cst_27 : f32 to vector<4x128xf32>
    %53 = arith.select %50, %51, %52 : vector<4x128xi1>, vector<4x128xf32>
    %54 = arith.index_cast %c1_i32 : i32 to index
    %c0_28 = arith.constant 0 : index
    %c0_29 = arith.constant 0 : index
    %55 = vector.load %arg7[%54, %c0_28, %c0_29] : memref<2x4x128xf32, #tpu.memory_space<vmem>>, vector<1x4x128xf32>
    %56 = vector.shape_cast %55 : vector<1x4x128xf32> to vector<4x128xf32>
    %57 = vector.shape_cast %53 : vector<4x128xf32> to vector<1x4x128xf32>
    tpu.vector_store %arg7[%54, %c0_28, %c0_29], %57 {strides = array<i32>} : memref<2x4x128xf32, #tpu.memory_space<vmem>>, vector<1x4x128xf32>,
    %c2_i32 = arith.constant 2 : i32
    %c0_30 = arith.constant 0 : index
    %c0_31 = arith.constant 0 : index
    %58 = vector.load %arg8[%c0_30, %c0_31] : memref<32x128xf32, #tpu.memory_space<vmem>>, vector<32x128xf32>
    tpu.vector_store %arg8[%c0_30, %c0_31], %48 {strides = array<i32>} : memref<32x128xf32, #tpu.memory_space<vmem>>, vector<32x128xf32>,
    return
  }
  func.func @transform_0(%arg0: i32, %arg1: i32) -> (i32, i32, i32) {
    %c0_i32 = arith.constant 0 : i32
    %c0_i32_0 = arith.constant 0 : i32
    return %arg1, %c0_i32, %arg0 : i32, i32, i32
  }
  func.func @transform_1(%arg0: i32, %arg1: i32) -> (i32, i32) {
    %c0_i32 = arith.constant 0 : i32
    %c0_i32_0 = arith.constant 0 : i32
    %c0_i32_1 = arith.constant 0 : i32
    return %c0_i32, %c0_i32_0 : i32, i32
  }
  func.func @transform_2(%arg0: i32, %arg1: i32) -> (i32, i32) {
    %c0_i32 = arith.constant 0 : i32
    %c0_i32_0 = arith.constant 0 : i32
    %c0_i32_1 = arith.constant 0 : i32
    return %c0_i32, %c0_i32_0 : i32, i32
  }
  func.func @transform_3(%arg0: i32, %arg1: i32) -> (i32, i32) {
    %c0_i32 = arith.constant 0 : i32
    %c0_i32_0 = arith.constant 0 : i32
    %c0_i32_1 = arith.constant 0 : i32
    return %c0_i32, %c0_i32_0 : i32, i32
  }
  func.func @transform_4(%arg0: i32, %arg1: i32) -> (i32, i32) {
    %c0_i32 = arith.constant 0 : i32
    %c0_i32_0 = arith.constant 0 : i32
    %c0_i32_1 = arith.constant 0 : i32
    return %c0_i32, %c0_i32_0 : i32, i32
  }
  func.func @transform_5(%arg0: i32, %arg1: i32) -> (i32, i32, i32) {
    %c0_i32 = arith.constant 0 : i32
    %c0_i32_0 = arith.constant 0 : i32
    return %arg1, %c0_i32, %arg0 : i32, i32, i32
  }
}

</mosaic_0001>

<llo_original>
// kernel: tpu_custom_call.1
$region0: #{tpu_custom_call.1}
  #allocation0 [shape = 'u32[]', space=smem, size = 0x4, offset = 0x4, fixed_abs, tag = 'smem constant byte address 0x4 - core index']
  #allocation1 [shape = 'u32[144,128]{1,0:T(1,128)}', space=vmem, size = 0x12000, scoped, tag = 'internal scratch']
  #allocation2 [shape = 'f32[32,128]{1,0:T(8,128)}', space=vmem, size = 0x4000, scoped, tag = 'scratch operand']
  %s0 = inlined_call_operand.vmem [shape: f32[2,8,128], index: 0, kind: input, shape index: {}]
  %s1 = inlined_call_operand.vmem [shape: f32[64,40], index: 1, kind: input, shape index: {}]
  %s2 = inlined_call_operand.vmem [shape: f32[64,1], index: 2, kind: input, shape index: {}]
  %s3 = inlined_call_operand.vmem [shape: f32[4,32], index: 3, kind: input, shape index: {}]
  %s4 = inlined_call_operand.vmem [shape: f32[4,1], index: 4, kind: input, shape index: {}]
  %s5 = inlined_call_operand.hbm [shape: f32[2,4,128], index: 5, kind: output, shape index: {}]
  %s6 = sld [smem:[#allocation0]]
  $region34: #{tpu_custom_call.1} parent=0
    _
  %s8 = ssub.s32 1, %s6
  %s9 = scalar_select 0, %s8, %s6
  $region1: #{tpu_custom_call.1} parent=0
    #allocation3 [shape = 'u8[4096]{0}', space=vmem, size = 0x1000, scoped, tag = 'output window, operand 0, single buffered']
    #allocation4 [shape = 's32[1]{0}', space=sflag, size = 0x4, scoped, tag = 'scoped memory for tpu_custom_call.1']
    %10 = vsyncpa [#allocation4], 0
    // Predicated region
    $region2: #{tpu_custom_call.1} parent=1 // pred_check
      _
    $region3: #{tpu_custom_call.1} parent=1 // pred_check_branch
      %12 = sbr.rel (0) target = $region5
    $region4: #{tpu_custom_call.1} parent=1 // pred_region
      _
    $region5: #{tpu_custom_call.1} parent=1 // pred_fallthru
      _
    // Predicated region
    $region6: #{tpu_custom_call.1} parent=1 // pred_check
      _
    $region7: #{tpu_custom_call.1} parent=1 // pred_check_branch
      %14 = sbr.rel (0) target = $region9
    $region8: #{tpu_custom_call.1} parent=1 // pred_region
      _
    $region9: #{tpu_custom_call.1} parent=1 // pred_fallthru
      _
    // Predicated region
    $region10: #{tpu_custom_call.1} parent=1 // pred_check
      _
    $region11: #{tpu_custom_call.1} parent=1 // pred_check_branch
      %16 = sbr.rel (0) target = $region13
    $region12: #{tpu_custom_call.1} parent=1 // pred_region
      _
    $region13: #{tpu_custom_call.1} parent=1 // pred_fallthru
      _
    // Predicated region
    $region14: #{tpu_custom_call.1} parent=1 // pred_check
      _
    $region15: #{tpu_custom_call.1} parent=1 // pred_check_branch
      %18 = sbr.rel (0) target = $region17
    $region16: #{tpu_custom_call.1} parent=1 // pred_region
      _
    $region17: #{tpu_custom_call.1} parent=1 // pred_fallthru
      _
    // Predicated region
    $region18: #{tpu_custom_call.1} parent=1 // pred_check
      _
    $region19: #{tpu_custom_call.1} parent=1 // pred_check_branch
      %20 = sbr.rel (0) target = $region21
    $region20: #{tpu_custom_call.1} parent=1 // pred_region
      _
    $region21: #{tpu_custom_call.1} parent=1 // pred_fallthru
      _
    %p21 = scmp.eq.s32.totalorder 0, 0
    // Predicated region
    $region22: #{tpu_custom_call.1} parent=1 // pred_check
      %p22 = pneg %p21
    $region23: #{tpu_custom_call.1} parent=1 // pred_check_branch
      %24 = sbr.rel (%p22) target = $region25
    $region24: #{tpu_custom_call.1} parent=1 // pred_region
      %25 = vst [vmem:[#allocation2] sm:$0xff] 0.0
      %26 = vst [vmem:[#allocation2 + $0x8] sm:$0xff] 0.0
      %27 = vst [vmem:[#allocation2 + $0x10] sm:$0xff] 0.0
      %28 = vst [vmem:[#allocation2 + $0x18] sm:$0xff] 0.0
    $region25: #{tpu_custom_call.1} parent=1 // pred_fallthru
      _
    %v29 = vld [vmem:[%s1] sm:$0xff]
    %v30 = vld [vmem:[%s1 + $0x8] sm:$0xff]
    %v31 = vld [vmem:[%s1 + $0x10] sm:$0xff]
    %v32 = vld [vmem:[%s1 + $0x18] sm:$0xff]
    %v33 = vld [vmem:[%s1 + $0x20] sm:$0xff]
    %v34 = vld [vmem:[%s1 + $0x28] sm:$0xff]
    %v35 = vld [vmem:[%s1 + $0x30] sm:$0xff]
    %v36 = vld [vmem:[%s1 + $0x38] sm:$0xff]
    %v37 = vld [vmem:[%s3] sm:$0xf]
    %v38 = vld [vmem:[%s2] sm:$0xff]
    %v39 = vld [vmem:[%s2 + $0x8] sm:$0xff]
    %v40 = vld [vmem:[%s2 + $0x10] sm:$0xff]
    %v41 = vld [vmem:[%s2 + $0x18] sm:$0xff]
    %v42 = vld [vmem:[%s2 + $0x20] sm:$0xff]
    %v43 = vld [vmem:[%s2 + $0x28] sm:$0xff]
    %v44 = vld [vmem:[%s2 + $0x30] sm:$0xff]
    %v45 = vld [vmem:[%s2 + $0x38] sm:$0xff]
    %47 = vset.pattern.permute.xlu0 0
    %48 = vperm.xlu0 %47, %v38
    %v49 = vpop.permute.xlu0 %48
    %52 = vset.pattern.permute.xlu0 0
    %53 = vperm.xlu0 %52, %v39
    %v54 = vpop.permute.xlu0 %53
    %57 = vset.pattern.permute.xlu0 0
    %58 = vperm.xlu0 %57, %v40
    %v59 = vpop.permute.xlu0 %58
    %62 = vset.pattern.permute.xlu0 0
    %63 = vperm.xlu0 %62, %v41
    %v64 = vpop.permute.xlu0 %63
    %67 = vset.pattern.permute.xlu0 0
    %68 = vperm.xlu0 %67, %v42
    %v69 = vpop.permute.xlu0 %68
    %72 = vset.pattern.permute.xlu0 0
    %73 = vperm.xlu0 %72, %v43
    %v74 = vpop.permute.xlu0 %73
    %77 = vset.pattern.permute.xlu0 0
    %78 = vperm.xlu0 %77, %v44
    %v79 = vpop.permute.xlu0 %78
    %82 = vset.pattern.permute.xlu0 0
    %83 = vperm.xlu0 %82, %v45
    %v84 = vpop.permute.xlu0 %83
    %v86 = vld [vmem:[%s4] sm:$0xf]
    %88 = vset.pattern.permute.xlu0 0
    %89 = vperm.xlu0 %88, %v86
    %v90 = vpop.permute.xlu0 %89
    %v92 = vld [vmem:[#allocation2] sm:$0xff]
    %v93 = vld [vmem:[#allocation2 + $0x8] sm:$0xff]
    %v94 = vld [vmem:[#allocation2 + $0x10] sm:$0xff]
    %v95 = vld [vmem:[#allocation2 + $0x18] sm:$0xff]
    %v96 = vld [vmem:[%s0] sm:$0xff]
    %vm97 = vcmask 326656
    %v99 = vsel %vm97, %v29, 0
    %v102 = vsel %vm97, %v30, 0
    %v105 = vsel %vm97, %v31, 0
    %v108 = vsel %vm97, %v32, 0
    %v111 = vsel %vm97, %v33, 0
    %v114 = vsel %vm97, %v34, 0
    %v117 = vsel %vm97, %v35, 0
    %v120 = vsel %vm97, %v36, 0
    %122 = vmatprep.subr.mxu0 0.0
    %123 = vmatpush1.msra.mxu0 0.0
    %124 = vmatprep.subr.mxu0 0.0
    %125 = vmatpush1.msra.mxu0 0.0
    %126 = vmatprep.subr.mxu0 0.0
    %127 = vmatpush1.msra.mxu0 0.0
    %128 = vmatprep.subr.mxu0 0.0
    %129 = vmatpush1.msra.mxu0 0.0
    %130 = vmatprep.subr.mxu0 0.0
    %131 = vmatpush1.msra.mxu0 0.0
    %132 = vmatprep.subr.mxu0 0.0
    %133 = vmatpush1.msra.mxu0 0.0
    %134 = vmatprep.subr.mxu0 0.0
    %135 = vmatpush1.msra.mxu0 0.0
    %136 = vmatprep.subr.mxu0 0.0
    %137 = vmatpush1.msra.mxu0 0.0
    %138 = vmatprep.subr.mxu0 0.0
    %139 = vmatpush1.msra.mxu0 0.0
    %140 = vmatprep.subr.mxu0 0.0
    %141 = vmatpush1.msra.mxu0 0.0
    %142 = vmatprep.subr.mxu0 0.0
    %143 = vmatpush1.msra.mxu0 0.0
    %144 = vmatprep.subr.mxu0 0.0
    %145 = vmatpush1.msra.mxu0 %v95
    %146 = vmatprep.subr.mxu0 0.0
    %147 = vmatpush1.msra.mxu0 %v94
    %148 = vmatprep.subr.mxu0 0.0
    %149 = vmatpush1.msra.mxu0 %v93
    %150 = vmatprep.subr.mxu0 0.0
    %151 = vmatpush1.msra.mxu0 %v92
    %152 = vmatprep.subr.mxu0 0.0
    %153 = vmatpush1.msra.mxu0 %v96
    %154 = vmatprep.subr.mxu0 0.0
    %155 = vmatpush2.msra.mxu0 0.0
    %156 = vmatprep.subr.mxu0 0.0
    %157 = vmatpush2.msra.mxu0 0.0
    %158 = vmatprep.subr.mxu0 0.0
    %159 = vmatpush2.msra.mxu0 0.0
    %160 = vmatprep.subr.mxu0 0.0
    %161 = vmatpush2.msra.mxu0 0.0
    %162 = vmatprep.subr.mxu0 0.0
    %163 = vmatpush2.msra.mxu0 0.0
    %164 = vmatprep.subr.mxu0 0.0
    %165 = vmatpush2.msra.mxu0 0.0
    %166 = vmatprep.subr.mxu0 0.0
    %167 = vmatpush2.msra.mxu0 0.0
    %168 = vmatprep.subr.mxu0 0.0
    %169 = vmatpush2.msra.mxu0 0.0
    %170 = vmatprep.subr.mxu0 0.0
    %171 = vmatpush2.msra.mxu0 0.0
    %172 = vmatprep.subr.mxu0 0.0
    %173 = vmatpush2.msra.mxu0 0.0
    %174 = vmatprep.subr.mxu0 0.0
    %175 = vmatpush2.msra.mxu0 0.0
    %176 = vmatprep.subr.mxu0 0.0
    %177 = vmatpush2.msra.mxu0 0.0
    %178 = vmatprep.subr.mxu0 0.0
    %179 = vmatpush2.msra.mxu0 0.0
    %180 = vmatprep.subr.mxu0 0.0
    %181 = vmatpush2.msra.mxu0 0.0
    %182 = vmatprep.subr.mxu0 0.0
    %183 = vmatpush2.msra.mxu0 0.0
    %184 = vmatprep.subr.mxu0 0.0
    %185 = vmatpush2.msra.mxu0 0.0
    %186 = vmatprep.mubr.f32.mxu0 0.0
    %187 = vmatmul.mubr.f32.gmra.mxu0 %v99
    %v188 = vpop.f32.mrf.mxu0
    %v189 = vadd.f32 %v49, %v188
    %v190 = vpop.f32.mrf.mxu0
    %191 = vmatprep.mubr.f32.mxu0 0.0
    %192 = vmatmul.mubr.f32.gmra.mxu0 %v102
    %v193 = vpop.f32.mrf.mxu0
    %v194 = vadd.f32 %v54, %v193
    %v195 = vpop.f32.mrf.mxu0
    %196 = vmatprep.mubr.f32.mxu0 0.0
    %197 = vmatmul.mubr.f32.gmra.mxu0 %v105
    %v198 = vpop.f32.mrf.mxu0
    %v199 = vadd.f32 %v59, %v198
    %v200 = vpop.f32.mrf.mxu0
    %201 = vmatprep.mubr.f32.mxu0 0.0
    %202 = vmatmul.mubr.f32.gmra.mxu0 %v108
    %v203 = vpop.f32.mrf.mxu0
    %v204 = vadd.f32 %v64, %v203
    %v205 = vpop.f32.mrf.mxu0
    %206 = vmatprep.mubr.f32.mxu0 0.0
    %207 = vmatmul.mubr.f32.gmra.mxu0 %v111
    %v208 = vpop.f32.mrf.mxu0
    %v209 = vadd.f32 %v69, %v208
    %v210 = vpop.f32.mrf.mxu0
    %211 = vmatprep.mubr.f32.mxu0 0.0
    %212 = vmatmul.mubr.f32.gmra.mxu0 %v114
    %v213 = vpop.f32.mrf.mxu0
    %v214 = vadd.f32 %v74, %v213
    %v215 = vpop.f32.mrf.mxu0
    %216 = vmatprep.mubr.f32.mxu0 0.0
    %217 = vmatmul.mubr.f32.gmra.mxu0 %v117
    %v218 = vpop.f32.mrf.mxu0
    %v219 = vadd.f32 %v79, %v218
    %v220 = vpop.f32.mrf.mxu0
    %221 = vmatprep.mubr.f32.mxu0 0.0
    %222 = vmatmul.mubr.f32.gmra.mxu0 %v120
    %v223 = vpop.f32.mrf.mxu0
    %v224 = vadd.f32 %v84, %v223
    %v225 = vpop.f32.mrf.mxu0
    %226 = vdwg.mxu0
    %v227 = vadd.f32 %v189, %v209
    %v228 = vadd.f32 %v194, %v214
    %v229 = vadd.f32 %v199, %v219
    %v230 = vadd.f32 %v204, %v224
    %v231 = vmax.f32 %v227, 0.0
    %v232 = vmax.f32 %v228, 0.0
    %v233 = vmax.f32 %v229, 0.0
    %v234 = vmax.f32 %v230, 0.0
    %v235 = vadd.f32 %v231, %v209
    %v236 = vadd.f32 %v232, %v214
    %v237 = vadd.f32 %v233, %v219
    %v238 = vadd.f32 %v234, %v224
    %v239 = vmax.f32 %v235, 0.0
    %v240 = vmax.f32 %v236, 0.0
    %v241 = vmax.f32 %v237, 0.0
    %v242 = vmax.f32 %v238, 0.0
    %vm243 = vcmask 261120
    %v245 = vsel %vm243, %v37, 0
    %247 = vmatprep.subr.mxu0 0.0
    %248 = vmatpush1.msra.mxu0 0.0
    %249 = vmatprep.subr.mxu0 0.0
    %250 = vmatpush1.msra.mxu0 0.0
    %251 = vmatprep.subr.mxu0 0.0
    %252 = vmatpush1.msra.mxu0 0.0
    %253 = vmatprep.subr.mxu0 0.0
    %254 = vmatpush1.msra.mxu0 0.0
    %255 = vmatprep.subr.mxu0 0.0
    %256 = vmatpush1.msra.mxu0 0.0
    %257 = vmatprep.subr.mxu0 0.0
    %258 = vmatpush1.msra.mxu0 0.0
    %259 = vmatprep.subr.mxu0 0.0
    %260 = vmatpush1.msra.mxu0 0.0
    %261 = vmatprep.subr.mxu0 0.0
    %262 = vmatpush1.msra.mxu0 0.0
    %263 = vmatprep.subr.mxu0 0.0
    %264 = vmatpush1.msra.mxu0 0.0
    %265 = vmatprep.subr.mxu0 0.0
    %266 = vmatpush1.msra.mxu0 0.0
    %267 = vmatprep.subr.mxu0 0.0
    %268 = vmatpush1.msra.mxu0 0.0
    %269 = vmatprep.subr.mxu0 0.0
    %270 = vmatpush1.msra.mxu0 0.0
    %271 = vmatprep.subr.mxu0 0.0
    %272 = vmatpush1.msra.mxu0 %v242
    %273 = vmatprep.subr.mxu0 0.0
    %274 = vmatpush1.msra.mxu0 %v241
    %275 = vmatprep.subr.mxu0 0.0
    %276 = vmatpush1.msra.mxu0 %v240
    %277 = vmatprep.subr.mxu0 0.0
    %278 = vmatpush1.msra.mxu0 %v239
    %279 = vmatprep.subr.mxu0 0.0
    %280 = vmatpush2.msra.mxu0 0.0
    %281 = vmatprep.subr.mxu0 0.0
    %282 = vmatpush2.msra.mxu0 0.0
    %283 = vmatprep.subr.mxu0 0.0
    %284 = vmatpush2.msra.mxu0 0.0
    %285 = vmatprep.subr.mxu0 0.0
    %286 = vmatpush2.msra.mxu0 0.0
    %287 = vmatprep.subr.mxu0 0.0
    %288 = vmatpush2.msra.mxu0 0.0
    %289 = vmatprep.subr.mxu0 0.0
    %290 = vmatpush2.msra.mxu0 0.0
    %291 = vmatprep.subr.mxu0 0.0
    %292 = vmatpush2.msra.mxu0 0.0
    %293 = vmatprep.subr.mxu0 0.0
    %294 = vmatpush2.msra.mxu0 0.0
    %295 = vmatprep.subr.mxu0 0.0
    %296 = vmatpush2.msra.mxu0 0.0
    %297 = vmatprep.subr.mxu0 0.0
    %298 = vmatpush2.msra.mxu0 0.0
    %299 = vmatprep.subr.mxu0 0.0
    %300 = vmatpush2.msra.mxu0 0.0
    %301 = vmatprep.subr.mxu0 0.0
    %302 = vmatpush2.msra.mxu0 0.0
    %303 = vmatprep.subr.mxu0 0.0
    %304 = vmatpush2.msra.mxu0 0.0
    %305 = vmatprep.subr.mxu0 0.0
    %306 = vmatpush2.msra.mxu0 0.0
    %307 = vmatprep.subr.mxu0 0.0
    %308 = vmatpush2.msra.mxu0 0.0
    %309 = vmatprep.subr.mxu0 0.0
    %310 = vmatpush2.msra.mxu0 0.0
    %311 = vmatprep.mubr.f32.mxu0 0.0
    %312 = vmatmul.mubr.f32.gmra.mxu0 %v245
    %v313 = vpop.f32.mrf.mxu0
    %v314 = vadd.f32 0.0, %v313
    %v315 = vpop.f32.mrf.mxu0
    %316 = vdwg.mxu0
    %vm317 = vcmp.ge.f32.partialorder %v314, %v90
    %v318 = vsel %vm317, 1.0, 0.0
    %319 = vst [vmem:[#allocation3] sm:$0xf] %v318
    %s320 = scalar_lea.vmem %s0, 8
    %v321 = vld [vmem:[%s320] sm:$0xff]
    %322 = vmatprep.subr.mxu0 0.0
    %323 = vmatpush1.msra.mxu0 0.0
    %324 = vmatprep.subr.mxu0 0.0
    %325 = vmatpush1.msra.mxu0 0.0
    %326 = vmatprep.subr.mxu0 0.0
    %327 = vmatpush1.msra.mxu0 0.0
    %328 = vmatprep.subr.mxu0 0.0
    %329 = vmatpush1.msra.mxu0 0.0
    %330 = vmatprep.subr.mxu0 0.0
    %331 = vmatpush1.msra.mxu0 0.0
    %332 = vmatprep.subr.mxu0 0.0
    %333 = vmatpush1.msra.mxu0 0.0
    %334 = vmatprep.subr.mxu0 0.0
    %335 = vmatpush1.msra.mxu0 0.0
    %336 = vmatprep.subr.mxu0 0.0
    %337 = vmatpush1.msra.mxu0 0.0
    %338 = vmatprep.subr.mxu0 0.0
    %339 = vmatpush1.msra.mxu0 0.0
    %340 = vmatprep.subr.mxu0 0.0
    %341 = vmatpush1.msra.mxu0 0.0
    %342 = vmatprep.subr.mxu0 0.0
    %343 = vmatpush1.msra.mxu0 0.0
    %344 = vmatprep.subr.mxu0 0.0
    %345 = vmatpush1.msra.mxu0 %v242
    %346 = vmatprep.subr.mxu0 0.0
    %347 = vmatpush1.msra.mxu0 %v241
    %348 = vmatprep.subr.mxu0 0.0
    %349 = vmatpush1.msra.mxu0 %v240
    %350 = vmatprep.subr.mxu0 0.0
    %351 = vmatpush1.msra.mxu0 %v239
    %352 = vmatprep.subr.mxu0 0.0
    %353 = vmatpush1.msra.mxu0 %v321
    %354 = vmatprep.subr.mxu0 0.0
    %355 = vmatpush2.msra.mxu0 0.0
    %356 = vmatprep.subr.mxu0 0.0
    %357 = vmatpush2.msra.mxu0 0.0
    %358 = vmatprep.subr.mxu0 0.0
    %359 = vmatpush2.msra.mxu0 0.0
    %360 = vmatprep.subr.mxu0 0.0
    %361 = vmatpush2.msra.mxu0 0.0
    %362 = vmatprep.subr.mxu0 0.0
    %363 = vmatpush2.msra.mxu0 0.0
    %364 = vmatprep.subr.mxu0 0.0
    %365 = vmatpush2.msra.mxu0 0.0
    %366 = vmatprep.subr.mxu0 0.0
    %367 = vmatpush2.msra.mxu0 0.0
    %368 = vmatprep.subr.mxu0 0.0
    %369 = vmatpush2.msra.mxu0 0.0
    %370 = vmatprep.subr.mxu0 0.0
    %371 = vmatpush2.msra.mxu0 0.0
    %372 = vmatprep.subr.mxu0 0.0
    %373 = vmatpush2.msra.mxu0 0.0
    %374 = vmatprep.subr.mxu0 0.0
    %375 = vmatpush2.msra.mxu0 0.0
    %376 = vmatprep.subr.mxu0 0.0
    %377 = vmatpush2.msra.mxu0 0.0
    %378 = vmatprep.subr.mxu0 0.0
    %379 = vmatpush2.msra.mxu0 0.0
    %380 = vmatprep.subr.mxu0 0.0
    %381 = vmatpush2.msra.mxu0 0.0
    %382 = vmatprep.subr.mxu0 0.0
    %383 = vmatpush2.msra.mxu0 0.0
    %384 = vmatprep.subr.mxu0 0.0
    %385 = vmatpush2.msra.mxu0 0.0
    %386 = vmatprep.mubr.f32.mxu0 0.0
    %387 = vmatmul.mubr.f32.gmra.mxu0 %v99
    %v388 = vpop.f32.mrf.mxu0
    %v389 = vadd.f32 %v49, %v388
    %v390 = vpop.f32.mrf.mxu0
    %391 = vmatprep.mubr.f32.mxu0 0.0
    %392 = vmatmul.mubr.f32.gmra.mxu0 %v102
    %v393 = vpop.f32.mrf.mxu0
    %v394 = vadd.f32 %v54, %v393
    %v395 = vpop.f32.mrf.mxu0
    %396 = vmatprep.mubr.f32.mxu0 0.0
    %397 = vmatmul.mubr.f32.gmra.mxu0 %v105
    %v398 = vpop.f32.mrf.mxu0
    %v399 = vadd.f32 %v59, %v398
    %v400 = vpop.f32.mrf.mxu0
    %401 = vmatprep.mubr.f32.mxu0 0.0
    %402 = vmatmul.mubr.f32.gmra.mxu0 %v108
    %v403 = vpop.f32.mrf.mxu0
    %v404 = vadd.f32 %v64, %v403
    %v405 = vpop.f32.mrf.mxu0
    %406 = vmatprep.mubr.f32.mxu0 0.0
    %407 = vmatmul.mubr.f32.gmra.mxu0 %v111
    %v408 = vpop.f32.mrf.mxu0
    %v409 = vadd.f32 %v69, %v408
    %v410 = vpop.f32.mrf.mxu0
    %411 = vmatprep.mubr.f32.mxu0 0.0
    %412 = vmatmul.mubr.f32.gmra.mxu0 %v114
    %v413 = vpop.f32.mrf.mxu0
    %v414 = vadd.f32 %v74, %v413
    %v415 = vpop.f32.mrf.mxu0
    %416 = vmatprep.mubr.f32.mxu0 0.0
    %417 = vmatmul.mubr.f32.gmra.mxu0 %v117
    %v418 = vpop.f32.mrf.mxu0
    %v419 = vadd.f32 %v79, %v418
    %v420 = vpop.f32.mrf.mxu0
    %421 = vmatprep.mubr.f32.mxu0 0.0
    %422 = vmatmul.mubr.f32.gmra.mxu0 %v120
    %v423 = vpop.f32.mrf.mxu0
    %v424 = vadd.f32 %v84, %v423
    %v425 = vpop.f32.mrf.mxu0
    %426 = vdwg.mxu0
    %v427 = vadd.f32 %v389, %v409
    %v428 = vadd.f32 %v394, %v414
    %v429 = vadd.f32 %v399, %v419
    %v430 = vadd.f32 %v404, %v424
    %v431 = vmax.f32 %v427, 0.0
    %v432 = vmax.f32 %v428, 0.0
    %v433 = vmax.f32 %v429, 0.0
    %v434 = vmax.f32 %v430, 0.0
    %v435 = vadd.f32 %v431, %v409
    %v436 = vadd.f32 %v432, %v414
    %v437 = vadd.f32 %v433, %v419
    %v438 = vadd.f32 %v434, %v424
    %v439 = vmax.f32 %v435, 0.0
    %v440 = vmax.f32 %v436, 0.0
    %v441 = vmax.f32 %v437, 0.0
    %v442 = vmax.f32 %v438, 0.0
    %443 = vmatprep.subr.mxu0 0.0
    %444 = vmatpush1.msra.mxu0 0.0
    %445 = vmatprep.subr.mxu0 0.0
    %446 = vmatpush1.msra.mxu0 0.0
    %447 = vmatprep.subr.mxu0 0.0
    %448 = vmatpush1.msra.mxu0 0.0
    %449 = vmatprep.subr.mxu0 0.0
    %450 = vmatpush1.msra.mxu0 0.0
    %451 = vmatprep.subr.mxu0 0.0
    %452 = vmatpush1.msra.mxu0 0.0
    %453 = vmatprep.subr.mxu0 0.0
    %454 = vmatpush1.msra.mxu0 0.0
    %455 = vmatprep.subr.mxu0 0.0
    %456 = vmatpush1.msra.mxu0 0.0
    %457 = vmatprep.subr.mxu0 0.0
    %458 = vmatpush1.msra.mxu0 0.0
    %459 = vmatprep.subr.mxu0 0.0
    %460 = vmatpush1.msra.mxu0 0.0
    %461 = vmatprep.subr.mxu0 0.0
    %462 = vmatpush1.msra.mxu0 0.0
    %463 = vmatprep.subr.mxu0 0.0
    %464 = vmatpush1.msra.mxu0 0.0
    %465 = vmatprep.subr.mxu0 0.0
    %466 = vmatpush1.msra.mxu0 0.0
    %467 = vmatprep.subr.mxu0 0.0
    %468 = vmatpush1.msra.mxu0 %v442
    %469 = vmatprep.subr.mxu0 0.0
    %470 = vmatpush1.msra.mxu0 %v441
    %471 = vmatprep.subr.mxu0 0.0
    %472 = vmatpush1.msra.mxu0 %v440
    %473 = vmatprep.subr.mxu0 0.0
    %474 = vmatpush1.msra.mxu0 %v439
    %475 = vmatprep.subr.mxu0 0.0
    %476 = vmatpush2.msra.mxu0 0.0
    %477 = vmatprep.subr.mxu0 0.0
    %478 = vmatpush2.msra.mxu0 0.0
    %479 = vmatprep.subr.mxu0 0.0
    %480 = vmatpush2.msra.mxu0 0.0
    %481 = vmatprep.subr.mxu0 0.0
    %482 = vmatpush2.msra.mxu0 0.0
    %483 = vmatprep.subr.mxu0 0.0
    %484 = vmatpush2.msra.mxu0 0.0
    %485 = vmatprep.subr.mxu0 0.0
    %486 = vmatpush2.msra.mxu0 0.0
    %487 = vmatprep.subr.mxu0 0.0
    %488 = vmatpush2.msra.mxu0 0.0
    %489 = vmatprep.subr.mxu0 0.0
    %490 = vmatpush2.msra.mxu0 0.0
    %491 = vmatprep.subr.mxu0 0.0
    %492 = vmatpush2.msra.mxu0 0.0
    %493 = vmatprep.subr.mxu0 0.0
    %494 = vmatpush2.msra.mxu0 0.0
    %495 = vmatprep.subr.mxu0 0.0
    %496 = vmatpush2.msra.mxu0 0.0
    %497 = vmatprep.subr.mxu0 0.0
    %498 = vmatpush2.msra.mxu0 0.0
    %499 = vmatprep.subr.mxu0 0.0
    %500 = vmatpush2.msra.mxu0 0.0
    %501 = vmatprep.subr.mxu0 0.0
    %502 = vmatpush2.msra.mxu0 0.0
    %503 = vmatprep.subr.mxu0 0.0
    %504 = vmatpush2.msra.mxu0 0.0
    %505 = vmatprep.subr.mxu0 0.0
    %506 = vmatpush2.msra.mxu0 0.0
    %507 = vmatprep.mubr.f32.mxu0 0.0
    %508 = vmatmul.mubr.f32.gmra.mxu0 %v245
    %v509 = vpop.f32.mrf.mxu0
    %v510 = vadd.f32 0.0, %v509
    %v511 = vpop.f32.mrf.mxu0
    %512 = vdwg.mxu0
    %vm513 = vcmp.ge.f32.partialorder %v510, %v90
    %v514 = vsel %vm513, 1.0, 0.0
    %s515 = scalar_lea.vmem [#allocation3], 4
    %516 = vst [vmem:[%s515] sm:$0xf] %v514
    %517 = vst [vmem:[#allocation2] sm:$0xff] %v439
    %518 = vst [vmem:[#allocation2 + $0x8] sm:$0xff] %v440
    %519 = vst [vmem:[#allocation2 + $0x10] sm:$0xff] %v441
    %520 = vst [vmem:[#allocation2 + $0x18] sm:$0xff] %v442
    // Predicated region
    $region26: #{tpu_custom_call.1} parent=1 // pred_check
      _
    $region27: #{tpu_custom_call.1} parent=1 // pred_check_branch
      %522 = sbr.rel (0) target = $region29
    $region28: #{tpu_custom_call.1} parent=1 // pred_region
      %s524 = ssub.s32 128, 128
      %525 = vsyncadd [#allocation4], %s524
      %s526 = sshll.u32 [#allocation3], 4
      %s527 = int_to_ptr.vmem [resolvable:$true] %s526
      %532 = dma.vmem_to_hbm [thread:$0]  %s527, 128, %s5, [#allocation4], 64, 64, 4
    $region29: #{tpu_custom_call.1} parent=1 // pred_fallthru
      _
    // Predicated region
    $region30: #{tpu_custom_call.1} parent=1 // pred_check
      _
    $region31: #{tpu_custom_call.1} parent=1 // pred_check_branch
      %534 = sbr.rel (0) target = $region33
    $region32: #{tpu_custom_call.1} parent=1 // pred_region
      %535 = dma.done [#allocation4], 128
    $region33: #{tpu_custom_call.1} parent=1 // pred_fallthru
      _
    %536 = vsyncpa [#allocation4], 1

</llo_original>
